<compile_context>
chip_gen: v7x
topology: tpu7x:2x2x1
jax: 0.10.0
libtpu: 0.0.40
codegen_flags: <defaults>
</compile_context>

<pallas_src>
import jax
import jax.numpy as jnp
from jax.experimental import pallas as pl
from jax.experimental.pallas import tpu as pltpu


def _round_up(x, m):
    return (x + m - 1) // m * m


# --------------------------------------------------------------------------
# Path A: small in_chan (9*Cin <= 256) -- im2col packed along K, one matmul.
# --------------------------------------------------------------------------
def _matmul_head_kernel(x_ref, w1_ref, b1_ref, w2_ref, o_ref):
    """Fused (3x3 conv as one K-packed matmul) + BN shift + ReLU + 1x1 conv.

    x_ref : (TM, Kp)        bf16  im2col patches (9 taps packed along K)
    w1_ref: (Kp, Cmid_p)    bf16  3x3 weights, BN scale folded in
    b1_ref: (1, Cmid_p)     f32   folded BN shift
    w2_ref: (Cmid_p, Cout_p) bf16 1x1 conv weights
    o_ref : (TM, Cout_p)    f32
    """
    y = jnp.dot(x_ref[...], w1_ref[...], preferred_element_type=jnp.float32)
    y = jnp.maximum(y + b1_ref[...], 0.0)
    z = jnp.dot(y.astype(jnp.bfloat16), w2_ref[...],
                preferred_element_type=jnp.float32)
    o_ref[...] = z.astype(o_ref.dtype)


def _cabinet_output_im2col(x_nchw, w1f, shift, w2m, *, tile_m=256):
    N, Cin, H, W = x_nchw.shape
    Cmid = w1f.shape[-1]
    Cout = w2m.shape[-1]

    Kc = 9 * Cin
    Kp = _round_up(Kc, 128)           # lane-dense contraction depth
    Cmid_p = _round_up(Cmid, 128)
    Cout_p = _round_up(Cout, 128)
    TM = tile_m
    M = N * H * W
    Mp = _round_up(M, TM)

    # ---- one-time layout plumbing in XLA: im2col patches, bf16, lane-dense K
    x = jnp.transpose(x_nchw, (0, 2, 3, 1)).astype(jnp.float32)      # NHWC
    xp = jnp.pad(x, ((0, 0), (1, 1), (1, 1), (0, 0)))                # conv pad=1
    # Tap order (kh, kw, cin) matches w1f.reshape(9*Cin, Cmid) below.
    patches = jnp.concatenate(
        [xp[:, kh:kh + H, kw:kw + W, :] for kh in range(3) for kw in range(3)],
        axis=-1)                                                      # (N,H,W,9*Cin)
    lhs = patches.reshape(M, Kc)
    lhs = jnp.pad(lhs, ((0, Mp - M), (0, Kp - Kc))).astype(jnp.bfloat16)

    w1 = jnp.pad(w1f.reshape(Kc, Cmid),
                 ((0, Kp - Kc), (0, Cmid_p - Cmid))).astype(jnp.bfloat16)
    b1 = jnp.pad(shift, (0, Cmid_p - Cmid)).reshape(1, Cmid_p).astype(jnp.float32)
    w2 = jnp.pad(w2m, ((0, Cmid_p - Cmid), (0, Cout_p - Cout))).astype(jnp.bfloat16)

    flops = 2 * Mp * (Kp * Cmid_p + Cmid_p * Cout_p)
    bytes_accessed = (lhs.size * 2 + w1.size * 2 + b1.size * 4 + w2.size * 2
                      + Mp * Cout_p * 4)

    out = pl.pallas_call(
        _matmul_head_kernel,
        out_shape=jax.ShapeDtypeStruct((Mp, Cout_p), jnp.float32),
        grid_spec=pltpu.PrefetchScalarGridSpec(
            num_scalar_prefetch=0,
            grid=(Mp // TM,),
            in_specs=[
                pl.BlockSpec((TM, Kp), lambda i: (i, 0)),
                pl.BlockSpec((Kp, Cmid_p), lambda i: (0, 0)),
                pl.BlockSpec((1, Cmid_p), lambda i: (0, 0)),
                pl.BlockSpec((Cmid_p, Cout_p), lambda i: (0, 0)),
            ],
            out_specs=pl.BlockSpec((TM, Cout_p), lambda i: (i, 0)),
        ),
        compiler_params=pltpu.CompilerParams(
            dimension_semantics=("parallel",),
            vmem_limit_bytes=48 * 1024 * 1024,      # v7x-safe (64 MiB / TC)
        ),
        cost_estimate=pl.CostEstimate(flops=int(flops), transcendentals=0,
                                      bytes_accessed=int(bytes_accessed)),
    )(lhs, w1, b1, w2)

    out = out[:M].reshape(N, H, W, Cout_p)[..., :Cout]
    return jnp.transpose(out, (0, 3, 1, 2))


# --------------------------------------------------------------------------
# Path B: general in_chan -- row tiles with a 2-row halo, 9 MXU matmuls.
# --------------------------------------------------------------------------
def _halo_kernel(xa_ref, xb_ref, w1_ref, b1_ref, w2_ref, o_ref):
    """Fused 3x3 conv (BN scale folded) + shift + ReLU + 1x1 conv.

    xa_ref: (1, TH, Wp, Cin_p)    f32   main row block of padded input
    xb_ref: (1, 2,  Wp, Cin_p)    f32   2-row bottom halo
    w1_ref: (9, Cin_p, Cmid_p)    bf16  3x3 weights, BN scale folded in
    b1_ref: (1, Cmid_p)           f32   folded BN shift
    w2_ref: (Cmid_p, Cout_p)      bf16  1x1 conv weights
    o_ref : (1, 1, TH*Wp, Cout_p) f32   flattened (row, col) x class output
    """
    TH = xa_ref.shape[1]
    Wp = xa_ref.shape[2]
    cmid = w1_ref.shape[-1]

    # Rows needed by this tile, including the 2-row bottom halo.
    x = jnp.concatenate([xa_ref[0], xb_ref[0]], axis=0)   # (TH+2, Wp, Cin_p)
    L = (TH + 2) * Wp
    Lo = TH * Wp
    xf = x.reshape(L, x.shape[-1])   # layout-preserving: Wp % 8 == 0

    # 3x3 conv as 9 MXU matmuls.  kw shifts go through the XLU (pltpu.roll),
    # kh shifts are 8-aligned static sublane slices.  The bf16 cast is hoisted
    # out of the kh loop (3 casts instead of 9).
    # TODO(synk): store activations in bf16 and replace the sublane roll with
    #             wrapper-packed kw taps once packed-dtype sublane rotates are
    #             verified on the target Mosaic version.
    acc = jnp.zeros((Lo, cmid), jnp.float32)
    for kw in range(3):
        xw = xf if kw == 0 else pltpu.roll(xf, shift=L - kw, axis=0)
        xwb = xw.astype(jnp.bfloat16)
        for kh in range(3):
            tap = xwb[kh * Wp: kh * Wp + Lo, :]
            acc = acc + jnp.dot(tap, w1_ref[kh * 3 + kw],
                                preferred_element_type=jnp.float32)

    # BN shift (scale already folded into w1) + ReLU.
    y = jnp.maximum(acc + b1_ref[...], 0.0)

    # 1x1 conv == channel matmul on the MXU.
    z = jnp.dot(y.astype(jnp.bfloat16), w2_ref[...],
                preferred_element_type=jnp.float32)
    o_ref[0, 0] = z.astype(o_ref.dtype)


def _cabinet_output_halo(x_nchw, w1f, shift, w2m, *, tile_rows=16):
    N, Cin, H, W = x_nchw.shape
    Cmid = w1f.shape[-1]
    Cout = w2m.shape[-1]

    TH = tile_rows
    # The halo block has exactly 2 rows and its block index is (t+1)*(TH//2);
    # this requires TH to be even.
    assert TH % 2 == 0, "tile_rows must be even"
    n_tiles = -(-H // TH)                       # ceil(H / TH)
    Wp = _round_up(W + 2, 8)                    # conv pad + sublane alignment
    # roll wrap-around must land in zero padding columns (sliced away later).
    assert Wp >= W + 2
    Cin_p = _round_up(Cin, 128)
    Cmid_p = _round_up(Cmid, 128)
    Cout_p = _round_up(Cout, 128)

    # ---- layout plumbing (plain XLA, done once) ----
    x = jnp.transpose(x_nchw, (0, 2, 3, 1)).astype(jnp.float32)     # NHWC
    xpad = jnp.pad(x, ((0, 0),
                       (1, n_tiles * TH + 1 - H),   # conv pad + row-tile round-up
                       (1, Wp - 1 - W),             # conv pad + 8-alignment
                       (0, Cin_p - Cin)))           # lane-dense channels

    w1 = jnp.pad(w1f, ((0, 0), (0, 0), (0, Cin_p - Cin), (0, Cmid_p - Cmid)))
    w1 = w1.reshape(9, Cin_p, Cmid_p).astype(jnp.bfloat16)
    b1 = jnp.pad(shift, (0, Cmid_p - Cmid)).reshape(1, Cmid_p).astype(jnp.float32)
    w2 = jnp.pad(w2m, ((0, Cmid_p - Cmid), (0, Cout_p - Cout))).astype(jnp.bfloat16)

    flops = 2 * N * n_tiles * TH * Wp * (9 * Cin_p * Cmid_p + Cmid_p * Cout_p)
    bytes_accessed = (xpad.size * 4 + w1.size * 2 + b1.size * 4 + w2.size * 2
                      + N * n_tiles * TH * Wp * Cout_p * 4)

    out = pl.pallas_call(
        _halo_kernel,
        out_shape=jax.ShapeDtypeStruct((N, n_tiles, TH * Wp, Cout_p),
                                       jnp.float32),
        grid_spec=pltpu.PrefetchScalarGridSpec(
            num_scalar_prefetch=0,
            grid=(N, n_tiles),
            in_specs=[
                # main row block: padded rows [t*TH, (t+1)*TH)
                pl.BlockSpec((1, TH, Wp, Cin_p), lambda n, t: (n, t, 0, 0)),
                # 2-row halo:     padded rows [(t+1)*TH, (t+1)*TH + 2)
                pl.BlockSpec((1, 2, Wp, Cin_p),
                             lambda n, t: (n, (t + 1) * (TH // 2), 0, 0)),
                pl.BlockSpec((9, Cin_p, Cmid_p), lambda n, t: (0, 0, 0)),
                pl.BlockSpec((1, Cmid_p), lambda n, t: (0, 0)),
                pl.BlockSpec((Cmid_p, Cout_p), lambda n, t: (0, 0)),
            ],
            out_specs=pl.BlockSpec((1, 1, TH * Wp, Cout_p),
                                   lambda n, t: (n, t, 0, 0)),
        ),
        compiler_params=pltpu.CompilerParams(
            dimension_semantics=("parallel", "parallel"),
            vmem_limit_bytes=48 * 1024 * 1024,      # v7x-safe (64 MiB / TC)
        ),
        cost_estimate=pl.CostEstimate(flops=int(flops), transcendentals=0,
                                      bytes_accessed=int(bytes_accessed)),
    )(xpad, xpad, w1, b1, w2)

    # (N, n_tiles, TH*Wp, Cout_p) -> (N, H, W, Cout) -> NCHW
    out = out.reshape(N, n_tiles * TH, Wp, Cout_p)[:, :H, :W, :Cout]
    return jnp.transpose(out, (0, 3, 1, 2))


# --------------------------------------------------------------------------
# Public entry point.
# --------------------------------------------------------------------------
def cabinet_output(x_nchw, w_conv, bn, w_out, *, eps=1e-5):
    """CABiNetOutput forward (inference-mode BatchNorm).

    x_nchw: (N, Cin, H, W)        float32
    w_conv: (Cmid, Cin, 3, 3)     3x3 conv weight (no bias)
    bn    : (gamma, beta, running_mean, running_var), each (Cmid,)
    w_out : (Cout, Cmid, 1, 1)    1x1 conv weight (no bias)
    returns (N, Cout, H, W) float32
    """
    gamma, beta, mean, var = bn
    scale = (gamma / jnp.sqrt(var + eps)).astype(jnp.float32)        # (Cmid,)
    shift = (beta - mean * scale).astype(jnp.float32)
    # Fold the BN scale into the 3x3 weights; keep only the additive shift.
    w1f = (jnp.transpose(w_conv, (2, 3, 1, 0)) * scale).astype(jnp.float32)
    w2m = w_out[:, :, 0, 0].T.astype(jnp.float32)                    # (Cmid,Cout)

    Cin = x_nchw.shape[1]
    if 9 * Cin <= 256:
        # Small in_chan: pack all 9 taps along K -> one dense MXU matmul.
        return _cabinet_output_im2col(x_nchw, w1f, shift, w2m)
    # Large in_chan: per-tap matmuls have no padding waste; use the halo path.
    return _cabinet_output_halo(x_nchw, w1f, shift, w2m)


# ---------------- pure-JAX reference (for correctness check) ----------------
def _reference(x, w_conv, bn, w_out, *, eps=1e-5):
    y = jax.lax.conv_general_dilated(
        x, w_conv, window_strides=(1, 1), padding=((1, 1), (1, 1)),
        dimension_numbers=("NCHW", "OIHW", "NCHW"))
    gamma, beta, mean, var = bn
    scale = (gamma / jnp.sqrt(var + eps)).reshape(1, -1, 1, 1)
    shift = (beta - mean * gamma / jnp.sqrt(var + eps)).reshape(1, -1, 1, 1)
    y = jnp.maximum(y * scale + shift, 0.0)
    z = jax.lax.conv_general_dilated(
        y, w_out, window_strides=(1, 1), padding=((0, 0), (0, 0)),
        dimension_numbers=("NCHW", "OIHW", "NCHW"))
    return z


if __name__ == "__main__":
    key = jax.random.PRNGKey(0)
    ks = jax.random.split(key, 6)

    # Small shapes consistent with the module: batch=2, in_chan=4, spatial=16,
    # mid_chan=32, n_classes=8.
    N, Cin, H, W = 2, 4, 16, 16
    Cmid, n_classes = 32, 8

    x = jax.random.normal(ks[0], (N, Cin, H, W), jnp.float32)
    w_conv = 0.2 * jax.random.normal(ks[1], (Cmid, Cin, 3, 3), jnp.float32)
    w_out = 0.2 * jax.random.normal(ks[2], (n_classes, Cmid, 1, 1), jnp.float32)

    # Deterministic BatchNorm parameters (inference mode / running stats).
    bn = (1.0 + 0.1 * jax.random.normal(ks[3], (Cmid,), jnp.float32),
          0.1 * jax.random.normal(ks[4], (Cmid,), jnp.float32),
          0.05 * jax.random.normal(ks[5], (Cmid,), jnp.float32),
          jnp.ones((Cmid,), jnp.float32))

    # --- primary (im2col K-packed) path: the evaluated small-in_chan config ---
    out = jax.block_until_ready(cabinet_output(x, w_conv, bn, w_out))
    ref = _reference(x, w_conv, bn, w_out)
    assert out.shape == ref.shape == (N, n_classes, H, W)
    # bf16 MXU operands (f32 accumulation) -> ~1e-2 relative error vs f32 ref.
    assert jnp.allclose(out, ref, atol=1e-1, rtol=1e-1), (
        "im2col path mismatch vs reference; max abs diff = "
        f"{float(jnp.max(jnp.abs(out - ref)))}")

    # --- general (halo row-tile) path: exercised once with larger in_chan ---
    Cin2 = 40                                  # 9*Cin2 > 256 -> halo kernel
    x2 = jax.random.normal(ks[0], (N, Cin2, H, W), jnp.float32)
    w_conv2 = 0.1 * jax.random.normal(ks[1], (Cmid, Cin2, 3, 3), jnp.float32)
    out2 = jax.block_until_ready(cabinet_output(x2, w_conv2, bn, w_out))
    ref2 = _reference(x2, w_conv2, bn, w_out)
    assert out2.shape == ref2.shape == (N, n_classes, H, W)
    assert jnp.allclose(out2, ref2, atol=1e-1, rtol=1e-1), (
        "halo path mismatch vs reference; max abs diff = "
        f"{float(jnp.max(jnp.abs(out2 - ref2)))}")

    print("KERNEL_OK")
</pallas_src>

<mosaic_0001>
module attributes {stable_mosaic.version = 11 : i64} {
  func.func @_matmul_head_kernel(%arg0: i32, %arg1: memref<256x128xbf16, #tpu.memory_space<vmem>>, %arg2: memref<128x128xbf16, #tpu.memory_space<vmem>>, %arg3: memref<1x128xf32, #tpu.memory_space<vmem>>, %arg4: memref<128x128xbf16, #tpu.memory_space<vmem>>, %arg5: memref<256x128xf32, #tpu.memory_space<vmem>>) attributes {dimension_semantics = [#tpu.dimension_semantics<parallel>], iteration_bounds = array<i64: 2>, scalar_prefetch = 0 : i64, scratch_operands = 0 : i64, tpu.core_type = #tpu.core_type<tc>, window_params = [{transform_indices = @transform_0, window_bounds = array<i64: 256, 128>}, {pipeline_mode = #tpu.pipeline_mode<synchronous>, transform_indices = @transform_1, window_bounds = array<i64: 128, 128>}, {pipeline_mode = #tpu.pipeline_mode<synchronous>, transform_indices = @transform_2, window_bounds = array<i64: 1, 128>}, {pipeline_mode = #tpu.pipeline_mode<synchronous>, transform_indices = @transform_3, window_bounds = array<i64: 128, 128>}, {transform_indices = @transform_4, window_bounds = array<i64: 256, 128>}]} {
    %c0 = arith.constant 0 : index
    %c0_0 = arith.constant 0 : index
    %0 = vector.load %arg1[%c0, %c0_0] : memref<256x128xbf16, #tpu.memory_space<vmem>>, vector<256x128xbf16>
    %c0_1 = arith.constant 0 : index
    %c0_2 = arith.constant 0 : index
    %1 = vector.load %arg2[%c0_1, %c0_2] : memref<128x128xbf16, #tpu.memory_space<vmem>>, vector<128x128xbf16>
    %cst = arith.constant dense<0.000000e+00> : vector<256x128xf32>
    %2 = tpu.matmul %0, %1, %cst {dimension_numbers = #tpu.dot_dimension_numbers<[1], [0], [0], [1], [0, 0, 1, 1], [], []>} : vector<256x128xbf16>, vector<128x128xbf16>, vector<256x128xf32> -> vector<256x128xf32>
    %c0_3 = arith.constant 0 : index
    %c0_4 = arith.constant 0 : index
    %3 = vector.load %arg3[%c0_3, %c0_4] : memref<1x128xf32, #tpu.memory_space<vmem>>, vector<1x128xf32>
    %4 = vector.broadcast %3 : vector<1x128xf32> to vector<256x128xf32>
    %5 = arith.addf %2, %4 : vector<256x128xf32>
    %cst_5 = arith.constant 0.000000e+00 : f32
    %6 = vector.broadcast %cst_5 : f32 to vector<256x128xf32>
    %7 = arith.maximumf %5, %6 : vector<256x128xf32>
    %8 = arith.truncf %7 : vector<256x128xf32> to vector<256x128xbf16>
    %c0_6 = arith.constant 0 : index
    %c0_7 = arith.constant 0 : index
    %9 = vector.load %arg4[%c0_6, %c0_7] : memref<128x128xbf16, #tpu.memory_space<vmem>>, vector<128x128xbf16>
    %cst_8 = arith.constant dense<0.000000e+00> : vector<256x128xf32>
    %10 = tpu.matmul %8, %9, %cst_8 {dimension_numbers = #tpu.dot_dimension_numbers<[1], [0], [0], [1], [0, 0, 1, 1], [], []>} : vector<256x128xbf16>, vector<128x128xbf16>, vector<256x128xf32> -> vector<256x128xf32>
    %c0_9 = arith.constant 0 : index
    %c0_10 = arith.constant 0 : index
    %11 = vector.load %arg5[%c0_9, %c0_10] : memref<256x128xf32, #tpu.memory_space<vmem>>, vector<256x128xf32>
    tpu.vector_store %arg5[%c0_9, %c0_10], %10 {strides = array<i32>} : memref<256x128xf32, #tpu.memory_space<vmem>>, vector<256x128xf32>,
    return
  }
  func.func @transform_0(%arg0: i32) -> (i32, i32) {
    %c0_i32 = arith.constant 0 : i32
    %c0_i32_0 = arith.constant 0 : i32
    return %arg0, %c0_i32 : i32, i32
  }
  func.func @transform_1(%arg0: i32) -> (i32, i32) {
    %c0_i32 = arith.constant 0 : i32
    %c0_i32_0 = arith.constant 0 : i32
    %c0_i32_1 = arith.constant 0 : i32
    return %c0_i32, %c0_i32_0 : i32, i32
  }
  func.func @transform_2(%arg0: i32) -> (i32, i32) {
    %c0_i32 = arith.constant 0 : i32
    %c0_i32_0 = arith.constant 0 : i32
    %c0_i32_1 = arith.constant 0 : i32
    return %c0_i32, %c0_i32_0 : i32, i32
  }
  func.func @transform_3(%arg0: i32) -> (i32, i32) {
    %c0_i32 = arith.constant 0 : i32
    %c0_i32_0 = arith.constant 0 : i32
    %c0_i32_1 = arith.constant 0 : i32
    return %c0_i32, %c0_i32_0 : i32, i32
  }
  func.func @transform_4(%arg0: i32) -> (i32, i32) {
    %c0_i32 = arith.constant 0 : i32
    %c0_i32_0 = arith.constant 0 : i32
    return %arg0, %c0_i32 : i32, i32
  }
}

</mosaic_0001>

<llo_original>
// kernel: tpu_custom_call.1
$region0: #{tpu_custom_call.1}
  #allocation0 [shape = 'u32[]', space=smem, size = 0x4, offset = 0x4, fixed_abs, tag = 'smem constant byte address 0x4 - core index']
  #allocation1 [shape = 'u32[144,128]{1,0:T(1,128)}', space=vmem, size = 0x12000, scoped, tag = 'internal scratch']
  %s0 = inlined_call_operand.hbm [shape: bf16[512,128], index: 0, kind: input, shape index: {}]
  %s1 = inlined_call_operand.hbm [shape: bf16[128,128], index: 1, kind: input, shape index: {}]
  %s2 = inlined_call_operand.vmem [shape: f32[1,128], index: 2, kind: input, shape index: {}]
  %s3 = inlined_call_operand.hbm [shape: bf16[128,128], index: 3, kind: input, shape index: {}]
  %s4 = inlined_call_operand.hbm [shape: f32[512,128], index: 4, kind: output, shape index: {}]
  %s5 = sld [smem:[#allocation0]]
  $region61: #{tpu_custom_call.1} parent=0
    _
  %s7 = ssub.s32 1, %s5
  %s8 = scalar_select 0, %s7, %s5
  $region1: #{tpu_custom_call.1} parent=0
    #allocation2 [shape = 'u8[131072]{0}', space=vmem, size = 0x20000, scoped, tag = 'input window, operand 0']
    #allocation3 [shape = 's32[2]{0}', space=sflag, size = 0x8, scoped, tag = 'scoped memory for tpu_custom_call.1']
    #allocation4 [shape = 's32[2]{0}', space=sflag, size = 0x8, scoped, tag = 'scoped memory for tpu_custom_call.1']
    #allocation5 [shape = 'u8[32768]{0}', space=vmem, size = 0x8000, scoped, tag = 'input window, operand 1, single buffered']
    #allocation6 [shape = 's32[1]{0}', space=sflag, size = 0x4, scoped, tag = 'scoped memory for tpu_custom_call.1']
    #allocation7 [shape = 'u8[32768]{0}', space=vmem, size = 0x8000, scoped, tag = 'input window, operand 3, single buffered']
    #allocation8 [shape = 'u8[262144]{0}', space=vmem, size = 0x40000, scoped, tag = 'output window, operand 0']
    %9 = vsyncpa [#allocation3], 0
    %s10 = scalar_lea.sflag [#allocation3], 1
    %11 = vsyncpa %s10, 0
    %12 = vsyncpa [#allocation6], 0
    %13 = vsyncpa [#allocation4], 0
    %s14 = scalar_lea.sflag [#allocation4], 1
    %15 = vsyncpa %s14, 0
    loop: start=0, step=1, limit=4
    $region2: #{tpu_custom_call.1} parent=1 // loop_pre_header
      _
    $region3: #{tpu_custom_call.1} parent=1 // loop_header
      %s17 = sphi 0, %s21
      %p18 = scmp.ge.s32.totalorder %s17, 4
      %s27 = sphi 0, %s29
      %s30 = sphi 0, %s27
      %s31 = sphi 0, %s30
      %s47 = sphi 0, %s31
      %s51 = sphi 0, %s51
      %s53 = sphi 0, %s51
      %s54 = sphi 0, %s53
      %s68 = sphi 0, %s54
      %s72 = sphi 0, %s72
      %s74 = sphi 0, %s72
      %s75 = sphi 0, %s74
      %s89 = sphi 0, %s75
      %s93 = sphi 0, %s93
      %s95 = sphi 0, %s93
      %s96 = sphi 0, %s95
      %s110 = sphi 0, %s96
      %s116 = sphi 0, %s118
      %s119 = sphi 0, %s116
      %s120 = sphi 0, %s119
      %s136 = sphi 0, %s120
    $region4: #{tpu_custom_call.1} parent=1 // loop_header_branch
      %20 = sbr.rel (%p18) target = $region8
    $region5: #{tpu_custom_call.1} parent=1 // loop_body
      %s22 = ssub.s32 %s17, 1
      %s23 = ssub.s32 %s17, 2
      %s24 = sadd.s32 %s17, 1
      %s25 = ssub.s32 %s17, %s24
      %p26 = scmp.eq.s32.totalorder %s25, 0
      %s28 = sadd.s32 %s27, 1
      %s29 = scalar_select %p26, %s27, %s28
      %p32 = pneg %p26
      %p33 = scmp.eq.s32.totalorder %s17, 1
      %p34 = por %p32, %p33
      %p35 = scmp.ne.s32.totalorder %s27, %s30
      %p36 = scmp.eq.s32.totalorder %s17, 0
      %p37 = por %p35, %p36
      %p38 = scmp.ne.s32.totalorder %s27, %s30
      %p39 = scmp.eq.s32.totalorder %s22, 1
      %p40 = por %p38, %p39
      %p41 = scmp.ne.s32.totalorder %s30, %s31
      %p42 = scmp.eq.s32.totalorder %s22, 0
      %p43 = por %p41, %p42
      %p44 = scmp.ne.s32.totalorder %s30, %s31
      %p45 = scmp.eq.s32.totalorder %s23, 1
      %p46 = por %p44, %p45
      %p48 = scmp.ne.s32.totalorder %s31, %s47
      %p49 = scmp.eq.s32.totalorder %s23, 0
      %p50 = por %p48, %p49
      %s52 = sadd.s32 %s51, 1
      %p55 = scmp.eq.s32.totalorder %s17, 1
      %p56 = scmp.ne.s32.totalorder %s51, %s53
      %p57 = scmp.eq.s32.totalorder %s17, 0
      %p58 = por %p56, %p57
      %p59 = scmp.ne.s32.totalorder %s51, %s53
      %p60 = scmp.eq.s32.totalorder %s22, 1
      %p61 = por %p59, %p60
      %p62 = scmp.ne.s32.totalorder %s53, %s54
      %p63 = scmp.eq.s32.totalorder %s22, 0
      %p64 = por %p62, %p63
      %p65 = scmp.ne.s32.totalorder %s53, %s54
      %p66 = scmp.eq.s32.totalorder %s23, 1
      %p67 = por %p65, %p66
      %p69 = scmp.ne.s32.totalorder %s54, %s68
      %p70 = scmp.eq.s32.totalorder %s23, 0
      %p71 = por %p69, %p70
      %s73 = sadd.s32 %s72, 1
      %p76 = scmp.eq.s32.totalorder %s17, 1
      %p77 = scmp.ne.s32.totalorder %s72, %s74
      %p78 = scmp.eq.s32.totalorder %s17, 0
      %p79 = por %p77, %p78
      %p80 = scmp.ne.s32.totalorder %s72, %s74
      %p81 = scmp.eq.s32.totalorder %s22, 1
      %p82 = por %p80, %p81
      %p83 = scmp.ne.s32.totalorder %s74, %s75
      %p84 = scmp.eq.s32.totalorder %s22, 0
      %p85 = por %p83, %p84
      %p86 = scmp.ne.s32.totalorder %s74, %s75
      %p87 = scmp.eq.s32.totalorder %s23, 1
      %p88 = por %p86, %p87
      %p90 = scmp.ne.s32.totalorder %s75, %s89
      %p91 = scmp.eq.s32.totalorder %s23, 0
      %p92 = por %p90, %p91
      %s94 = sadd.s32 %s93, 1
      %p97 = scmp.eq.s32.totalorder %s17, 1
      %p98 = scmp.ne.s32.totalorder %s93, %s95
      %p99 = scmp.eq.s32.totalorder %s17, 0
      %p100 = por %p98, %p99
      %p101 = scmp.ne.s32.totalorder %s93, %s95
      %p102 = scmp.eq.s32.totalorder %s22, 1
      %p103 = por %p101, %p102
      %p104 = scmp.ne.s32.totalorder %s95, %s96
      %p105 = scmp.eq.s32.totalorder %s22, 0
      %p106 = por %p104, %p105
      %p107 = scmp.ne.s32.totalorder %s95, %s96
      %p108 = scmp.eq.s32.totalorder %s23, 1
      %p109 = por %p107, %p108
      %p111 = scmp.ne.s32.totalorder %s96, %s110
      %p112 = scmp.eq.s32.totalorder %s23, 0
      %p113 = por %p111, %p112
      %s114 = ssub.s32 %s17, %s24
      %p115 = scmp.eq.s32.totalorder %s114, 0
      %s117 = sadd.s32 %s116, 1
      %s118 = scalar_select %p115, %s116, %s117
      %p121 = pneg %p115
      %p122 = scmp.eq.s32.totalorder %s17, 1
      %p123 = por %p121, %p122
      %p124 = scmp.ne.s32.totalorder %s116, %s119
      %p125 = scmp.eq.s32.totalorder %s17, 0
      %p126 = por %p124, %p125
      %p127 = scmp.ne.s32.totalorder %s116, %s119
      %p128 = scmp.eq.s32.totalorder %s22, 1
      %p129 = por %p127, %p128
      %p130 = scmp.ne.s32.totalorder %s119, %s120
      %p131 = scmp.eq.s32.totalorder %s22, 0
      %p132 = por %p130, %p131
      %p133 = scmp.ne.s32.totalorder %s119, %s120
      %p134 = scmp.eq.s32.totalorder %s23, 1
      %p135 = por %p133, %p134
      %p137 = scmp.ne.s32.totalorder %s120, %s136
      %p138 = scmp.eq.s32.totalorder %s23, 0
      %p139 = por %p137, %p138
      %p140 = scmp.le.s32.totalorder 1, %s17
      %p141 = scmp.lt.s32.totalorder %s17, 3
      %p142 = pnand %p140, %p141
      %p143 = pneg %p142
      // Predicated region
      $region9: #{tpu_custom_call.1} parent=5 // pred_check
        _
      $region10: #{tpu_custom_call.1} parent=5 // pred_check_branch
        %145 = sbr.rel (%p142) target = $region12
      $region11: #{tpu_custom_call.1} parent=5 // pred_region
        %s146 = ssub.s32 %s17, 1
        // Predicated region
        $region13: #{tpu_custom_call.1} parent=11 // pred_check
          %p147 = pneg %p64
        $region14: #{tpu_custom_call.1} parent=11 // pred_check_branch
          %149 = sbr.rel (%p147) target = $region16
        $region15: #{tpu_custom_call.1} parent=11 // pred_region
          %s151 = ssub.s32 1024, 1024
          %152 = vsyncadd [#allocation6], %s151
          %s153 = sshll.u32 [#allocation5], 4
          %s154 = int_to_ptr.vmem [resolvable:$true] %s153
          %159 = dma.hbm_to_vmem [thread:$0]  %s1, 1024, %s154, [#allocation6], 64, 64, 4
        $region16: #{tpu_custom_call.1} parent=11 // pred_fallthru
          _
        // Predicated region
        $region17: #{tpu_custom_call.1} parent=11 // pred_check
          %p160 = pneg %p85
        $region18: #{tpu_custom_call.1} parent=11 // pred_check_branch
          %162 = sbr.rel (%p160) target = $region20
        $region19: #{tpu_custom_call.1} parent=11 // pred_region
          _
        $region20: #{tpu_custom_call.1} parent=11 // pred_fallthru
          _
        // Predicated region
        $region21: #{tpu_custom_call.1} parent=11 // pred_check
          %p163 = pneg %p106
        $region22: #{tpu_custom_call.1} parent=11 // pred_check_branch
          %165 = sbr.rel (%p163) target = $region24
        $region23: #{tpu_custom_call.1} parent=11 // pred_region
          %s167 = ssub.s32 1024, 1024
          %168 = vsyncadd [#allocation6], %s167
          %s169 = sshll.u32 [#allocation7], 4
          %s170 = int_to_ptr.vmem [resolvable:$true] %s169
          %175 = dma.hbm_to_vmem [thread:$0]  %s3, 1024, %s170, [#allocation6], 64, 64, 4
        $region24: #{tpu_custom_call.1} parent=11 // pred_fallthru
          _
      $region12: #{tpu_custom_call.1} parent=5 // pred_fallthru
        _
      %p176 = scmp.lt.s32.totalorder %s17, 2
      // Predicated region
      $region25: #{tpu_custom_call.1} parent=5 // pred_check
        %p177 = pneg %p176
      $region26: #{tpu_custom_call.1} parent=5 // pred_check_branch
        %179 = sbr.rel (%p177) target = $region28
      $region27: #{tpu_custom_call.1} parent=5 // pred_region
        // Predicated region
        $region29: #{tpu_custom_call.1} parent=27 // pred_check
          %p180 = pneg %p37
        $region30: #{tpu_custom_call.1} parent=27 // pred_check_branch
          %182 = sbr.rel (%p180) target = $region32
        $region31: #{tpu_custom_call.1} parent=27 // pred_region
          %s183 = sand.u32 %s27, 1
          %s184 = scalar_lea.sflag [#allocation3], %s183
          %s185 = sand.u32 %s27, 1
          %s186 = smul.addr %s185, 128
          %s187 = scalar_lea.vmem [#allocation2], %s186
          %s188 = smul.u32 32, %s17
          %s190 = ssub.s32 2048, 2048
          %191 = vsyncadd %s184, %s190
          %s192 = smul.addr %s188, 64
          %s193 = scalar_lea.hbm %s0, %s192
          %s194 = sshll.u32 %s187, 4
          %s195 = int_to_ptr.vmem [resolvable:$true] %s194
          %200 = dma.hbm_to_vmem [thread:$0]  %s193, 2048, %s195, %s184, 64, 64, 4
        $region32: #{tpu_custom_call.1} parent=27 // pred_fallthru
          _
      $region28: #{tpu_custom_call.1} parent=5 // pred_fallthru
        _
      %p201 = scmp.le.s32.totalorder 1, %s17
      %p202 = scmp.lt.s32.totalorder %s17, 3
      %p203 = pnand %p201, %p202
      %p204 = pneg %p203
      // Predicated region
      $region33: #{tpu_custom_call.1} parent=5 // pred_check
        _
      $region34: #{tpu_custom_call.1} parent=5 // pred_check_branch
        %206 = sbr.rel (%p203) target = $region36
      $region35: #{tpu_custom_call.1} parent=5 // pred_region
        %s207 = ssub.s32 %s17, 1
        %s208 = sand.u32 %s30, 1
        %s209 = scalar_lea.sflag [#allocation3], %s208
        %s210 = sand.u32 %s30, 1
        %s211 = smul.addr %s210, 128
        %s212 = scalar_lea.vmem [#allocation2], %s211
        // Predicated region
        $region37: #{tpu_custom_call.1} parent=35 // pred_check
          %p213 = pneg %p43
        $region38: #{tpu_custom_call.1} parent=35 // pred_check_branch
          %215 = sbr.rel (%p213) target = $region40
        $region39: #{tpu_custom_call.1} parent=35 // pred_region
          %216 = dma.done %s209, 2048
        $region40: #{tpu_custom_call.1} parent=35 // pred_fallthru
          _
        // Predicated region
        $region41: #{tpu_custom_call.1} parent=35 // pred_check
          %p217 = pneg %p64
        $region42: #{tpu_custom_call.1} parent=35 // pred_check_branch
          %219 = sbr.rel (%p217) target = $region44
        $region43: #{tpu_custom_call.1} parent=35 // pred_region
          %220 = dma.done [#allocation6], 1024
        $region44: #{tpu_custom_call.1} parent=35 // pred_fallthru
          _
        // Predicated region
        $region45: #{tpu_custom_call.1} parent=35 // pred_check
          %p221 = pneg %p106
        $region46: #{tpu_custom_call.1} parent=35 // pred_check_branch
          %223 = sbr.rel (%p221) target = $region48
        $region47: #{tpu_custom_call.1} parent=35 // pred_region
          %224 = dma.done [#allocation6], 1024
        $region48: #{tpu_custom_call.1} parent=35 // pred_fallthru
          _
        %s225 = sand.u32 %s30, 1
        %s226 = scalar_lea.sflag [#allocation3], %s225
        %s227 = sand.u32 %s30, 1
        %s228 = smul.addr %s227, 128
        %s229 = scalar_lea.vmem [#allocation2], %s228
        %p230 = pneg %p43
        %p231 = pneg %p40
        %p232 = pneg %p64
        %p233 = pneg %p61
        %p234 = pneg %p85
        %p235 = pneg %p82
        %p236 = pneg %p106
        %p237 = pneg %p103
        %p238 = pneg %p132
        %p239 = pneg %p129
        %s240 = sand.u32 %s119, 1
        %s241 = scalar_lea.sflag [#allocation4], %s240
        %s242 = sand.u32 %s119, 1
        %s243 = smul.addr %s242, 256
        %s244 = scalar_lea.vmem [#allocation8], %s243
        %s245 = smul.u32 32, %s22
        %s246 = smul.u32 32, %s22
        %v248 = vld [vmem:[%s212] sm:$0xf]
        %v249 = vld [vmem:[%s212 + $0x4] sm:$0xf]
        %v250 = vld [vmem:[%s212 + $0x8] sm:$0xf]
        %v251 = vld [vmem:[%s212 + $0xc] sm:$0xf]
        %v252 = vld [vmem:[%s212 + $0x10] sm:$0xf]
        %v253 = vld [vmem:[%s212 + $0x14] sm:$0xf]
        %v254 = vld [vmem:[%s212 + $0x18] sm:$0xf]
        %v255 = vld [vmem:[%s212 + $0x1c] sm:$0xf]
        %v256 = vld [vmem:[%s212 + $0x20] sm:$0xf]
        %v257 = vld [vmem:[%s212 + $0x24] sm:$0xf]
        %v258 = vld [vmem:[%s212 + $0x28] sm:$0xf]
        %v259 = vld [vmem:[%s212 + $0x2c] sm:$0xf]
        %v260 = vld [vmem:[%s212 + $0x30] sm:$0xf]
        %v261 = vld [vmem:[%s212 + $0x34] sm:$0xf]
        %v262 = vld [vmem:[%s212 + $0x38] sm:$0xf]
        %v263 = vld [vmem:[%s212 + $0x3c] sm:$0xf]
        %v264 = vld [vmem:[%s212 + $0x40] sm:$0xf]
        %v265 = vld [vmem:[%s212 + $0x44] sm:$0xf]
        %v266 = vld [vmem:[%s212 + $0x48] sm:$0xf]
        %v267 = vld [vmem:[%s212 + $0x4c] sm:$0xf]
        %v268 = vld [vmem:[%s212 + $0x50] sm:$0xf]
        %v269 = vld [vmem:[%s212 + $0x54] sm:$0xf]
        %v270 = vld [vmem:[%s212 + $0x58] sm:$0xf]
        %v271 = vld [vmem:[%s212 + $0x5c] sm:$0xf]
        %v272 = vld [vmem:[%s212 + $0x60] sm:$0xf]
        %v273 = vld [vmem:[%s212 + $0x64] sm:$0xf]
        %v274 = vld [vmem:[%s212 + $0x68] sm:$0xf]
        %v275 = vld [vmem:[%s212 + $0x6c] sm:$0xf]
        %v276 = vld [vmem:[%s212 + $0x70] sm:$0xf]
        %v277 = vld [vmem:[%s212 + $0x74] sm:$0xf]
        %v278 = vld [vmem:[%s212 + $0x78] sm:$0xf]
        %v279 = vld [vmem:[%s212 + $0x7c] sm:$0xf]
        %v280 = vld [vmem:[#allocation5] sm:$0xf]
        %v281 = vld [vmem:[#allocation5 + $0x4] sm:$0xf]
        %v282 = vld [vmem:[#allocation5 + $0x8] sm:$0xf]
        %v283 = vld [vmem:[#allocation5 + $0xc] sm:$0xf]
        %v284 = vld [vmem:[#allocation5 + $0x10] sm:$0xf]
        %v285 = vld [vmem:[#allocation5 + $0x14] sm:$0xf]
        %v286 = vld [vmem:[#allocation5 + $0x18] sm:$0xf]
        %v287 = vld [vmem:[#allocation5 + $0x1c] sm:$0xf]
        %v288 = vld [vmem:[#allocation5 + $0x20] sm:$0xf]
        %v289 = vld [vmem:[#allocation5 + $0x24] sm:$0xf]
        %v290 = vld [vmem:[#allocation5 + $0x28] sm:$0xf]
        %v291 = vld [vmem:[#allocation5 + $0x2c] sm:$0xf]
        %v292 = vld [vmem:[#allocation5 + $0x30] sm:$0xf]
        %v293 = vld [vmem:[#allocation5 + $0x34] sm:$0xf]
        %v294 = vld [vmem:[#allocation5 + $0x38] sm:$0xf]
        %v295 = vld [vmem:[#allocation5 + $0x3c] sm:$0xf]
        %v296 = vld [vmem:[%s2] sm:$0x1]
        %v298 = vlaneseq
        %v299 = vshrl.u32 %v298, 7
        %v300 = vsub.s32 0, %v299
        %v301 = vrot.slane %v296, %v300
        %v335 = vunpack.c.l.b16 %v248
        %v336 = vunpack.c.l.b16 %v249
        %v337 = vunpack.c.l.b16 %v250
        %v338 = vunpack.c.l.b16 %v251
        %v339 = vunpack.c.l.b16 %v252
        %v340 = vunpack.c.l.b16 %v253
        %v341 = vunpack.c.l.b16 %v254
        %v342 = vunpack.c.l.b16 %v255
        %v343 = vunpack.c.l.b16 %v256
        %v344 = vunpack.c.l.b16 %v257
        %v345 = vunpack.c.l.b16 %v258
        %v346 = vunpack.c.l.b16 %v259
        %v347 = vunpack.c.l.b16 %v260
        %v348 = vunpack.c.l.b16 %v261
        %v349 = vunpack.c.l.b16 %v262
        %v350 = vunpack.c.l.b16 %v263
        %v351 = vunpack.c.l.b16 %v264
        %v352 = vunpack.c.l.b16 %v265
        %v353 = vunpack.c.l.b16 %v266
        %v354 = vunpack.c.l.b16 %v267
        %v355 = vunpack.c.l.b16 %v268
        %v356 = vunpack.c.l.b16 %v269
        %v357 = vunpack.c.l.b16 %v270
        %v358 = vunpack.c.l.b16 %v271
        %v359 = vunpack.c.l.b16 %v272
        %v360 = vunpack.c.l.b16 %v273
        %v361 = vunpack.c.l.b16 %v274
        %v362 = vunpack.c.l.b16 %v275
        %v363 = vunpack.c.l.b16 %v276
        %v364 = vunpack.c.l.b16 %v277
        %v365 = vunpack.c.l.b16 %v278
        %v366 = vunpack.c.l.b16 %v279
        %v367 = vpack.c.b16 %v336, %v335
        %v368 = vpack.c.b16 %v338, %v337
        %v369 = vpack.c.b16 %v340, %v339
        %v370 = vpack.c.b16 %v342, %v341
        %v371 = vpack.c.b16 %v344, %v343
        %v372 = vpack.c.b16 %v346, %v345
        %v373 = vpack.c.b16 %v348, %v347
        %v374 = vpack.c.b16 %v350, %v349
        %v375 = vpack.c.b16 %v352, %v351
        %v376 = vpack.c.b16 %v354, %v353
        %v377 = vpack.c.b16 %v356, %v355
        %v378 = vpack.c.b16 %v358, %v357
        %v379 = vpack.c.b16 %v360, %v359
        %v380 = vpack.c.b16 %v362, %v361
        %v381 = vpack.c.b16 %v364, %v363
        %v382 = vpack.c.b16 %v366, %v365
        %v415 = vunpack.c.l.b16 %v280
        %v416 = vunpack.c.l.b16 %v281
        %v417 = vunpack.c.l.b16 %v282
        %v418 = vunpack.c.l.b16 %v283
        %v419 = vunpack.c.l.b16 %v284
        %v420 = vunpack.c.l.b16 %v285
        %v421 = vunpack.c.l.b16 %v286
        %v422 = vunpack.c.l.b16 %v287
        %v423 = vunpack.c.l.b16 %v288
        %v424 = vunpack.c.l.b16 %v289
        %v425 = vunpack.c.l.b16 %v290
        %v426 = vunpack.c.l.b16 %v291
        %v427 = vunpack.c.l.b16 %v292
        %v428 = vunpack.c.l.b16 %v293
        %v429 = vunpack.c.l.b16 %v294
        %v430 = vunpack.c.l.b16 %v295
        %v431 = vpack.c.b16 %v416, %v415
        %v432 = vpack.c.b16 %v418, %v417
        %v433 = vpack.c.b16 %v420, %v419
        %v434 = vpack.c.b16 %v422, %v421
        %v435 = vpack.c.b16 %v424, %v423
        %v436 = vpack.c.b16 %v426, %v425
        %v437 = vpack.c.b16 %v428, %v427
        %v438 = vpack.c.b16 %v430, %v429
        %447 = vmatprep.subr.bf16.mxu0 0
        %448 = vmatpush1.bf16.msra.mxu0 %v431
        %449 = vmatprep.subr.bf16.mxu0 0
        %450 = vmatpush1.bf16.msra.mxu0 %v432
        %451 = vmatprep.subr.bf16.mxu0 0
        %452 = vmatpush1.bf16.msra.mxu0 %v433
        %453 = vmatprep.subr.bf16.mxu0 0
        %454 = vmatpush1.bf16.msra.mxu0 %v434
        %455 = vmatprep.subr.bf16.mxu0 0
        %456 = vmatpush1.bf16.msra.mxu0 %v435
        %457 = vmatprep.subr.bf16.mxu0 0
        %458 = vmatpush1.bf16.msra.mxu0 %v436
        %459 = vmatprep.subr.bf16.mxu0 0
        %460 = vmatpush1.bf16.msra.mxu0 %v437
        %461 = vmatprep.subr.bf16.mxu0 0
        %462 = vmatpush1.bf16.msra.mxu0 %v438
        %463 = vmatprep.subr.bf16.mxu0 0
        %464 = vmatpush1.bf16.msra.mxu0 0
        %465 = vmatprep.subr.bf16.mxu0 0
        %466 = vmatpush1.bf16.msra.mxu0 0
        %467 = vmatprep.subr.bf16.mxu0 0
        %468 = vmatpush1.bf16.msra.mxu0 0
        %469 = vmatprep.subr.bf16.mxu0 0
        %470 = vmatpush1.bf16.msra.mxu0 0
        %471 = vmatprep.subr.bf16.mxu0 0
        %472 = vmatpush1.bf16.msra.mxu0 0
        %473 = vmatprep.subr.bf16.mxu0 0
        %474 = vmatpush1.bf16.msra.mxu0 0
        %475 = vmatprep.subr.bf16.mxu0 0
        %476 = vmatpush1.bf16.msra.mxu0 0
        %477 = vmatprep.subr.bf16.mxu0 0
        %478 = vmatpush1.bf16.msra.mxu0 0
        %479 = vmatprep.mubr.bf16.mxu0 0
        %480 = vmatmul.mubr.bf16.gmra.mrb[0].mxu0 %v367
        %v481 = vpop.f32.mrb[0].mxu0
        %v482 = vadd.f32 %v301, %v481
        %v483 = vpop.f32.mrb[0].mxu0
        %v484 = vpop.f32.mrb[0].mxu0
        %v485 = vadd.f32 %v301, %v484
        %v486 = vpop.f32.mrb[0].mxu0
        %487 = vmatprep.mubr.bf16.mxu0 0
        %488 = vmatmul.mubr.bf16.gmra.mrb[0].mxu0 %v368
        %v489 = vpop.f32.mrb[0].mxu0
        %v490 = vadd.f32 %v301, %v489
        %v491 = vpop.f32.mrb[0].mxu0
        %v492 = vpop.f32.mrb[0].mxu0
        %v493 = vadd.f32 %v301, %v492
        %v494 = vpop.f32.mrb[0].mxu0
        %495 = vmatprep.mubr.bf16.mxu0 0
        %496 = vmatmul.mubr.bf16.gmra.mrb[0].mxu0 %v369
        %v497 = vpop.f32.mrb[0].mxu0
        %v498 = vadd.f32 %v301, %v497
        %v499 = vpop.f32.mrb[0].mxu0
        %v500 = vpop.f32.mrb[0].mxu0
        %v501 = vadd.f32 %v301, %v500
        %v502 = vpop.f32.mrb[0].mxu0
        %503 = vmatprep.mubr.bf16.mxu0 0
        %504 = vmatmul.mubr.bf16.gmra.mrb[0].mxu0 %v370
        %v505 = vpop.f32.mrb[0].mxu0
        %v506 = vadd.f32 %v301, %v505
        %v507 = vpop.f32.mrb[0].mxu0
        %v508 = vpop.f32.mrb[0].mxu0
        %v509 = vadd.f32 %v301, %v508
        %v510 = vpop.f32.mrb[0].mxu0
        %511 = vmatprep.mubr.bf16.mxu0 0
        %512 = vmatmul.mubr.bf16.gmra.mrb[0].mxu0 %v371
        %v513 = vpop.f32.mrb[0].mxu0
        %v514 = vadd.f32 %v301, %v513
        %v515 = vpop.f32.mrb[0].mxu0
        %v516 = vpop.f32.mrb[0].mxu0
        %v517 = vadd.f32 %v301, %v516
        %v518 = vpop.f32.mrb[0].mxu0
        %519 = vmatprep.mubr.bf16.mxu0 0
        %520 = vmatmul.mubr.bf16.gmra.mrb[0].mxu0 %v372
        %v521 = vpop.f32.mrb[0].mxu0
        %v522 = vadd.f32 %v301, %v521
        %v523 = vpop.f32.mrb[0].mxu0
        %v524 = vpop.f32.mrb[0].mxu0
        %v525 = vadd.f32 %v301, %v524
        %v526 = vpop.f32.mrb[0].mxu0
        %527 = vmatprep.mubr.bf16.mxu0 0
        %528 = vmatmul.mubr.bf16.gmra.mrb[0].mxu0 %v373
        %v529 = vpop.f32.mrb[0].mxu0
        %v530 = vadd.f32 %v301, %v529
        %v531 = vpop.f32.mrb[0].mxu0
        %v532 = vpop.f32.mrb[0].mxu0
        %v533 = vadd.f32 %v301, %v532
        %v534 = vpop.f32.mrb[0].mxu0
        %535 = vmatprep.mubr.bf16.mxu0 0
        %536 = vmatmul.mubr.bf16.gmra.mrb[0].mxu0 %v374
        %v537 = vpop.f32.mrb[0].mxu0
        %v538 = vadd.f32 %v301, %v537
        %v539 = vpop.f32.mrb[0].mxu0
        %v540 = vpop.f32.mrb[0].mxu0
        %v541 = vadd.f32 %v301, %v540
        %v542 = vpop.f32.mrb[0].mxu0
        %543 = vmatprep.mubr.bf16.mxu0 0
        %544 = vmatmul.mubr.bf16.gmra.mrb[0].mxu0 %v375
        %v545 = vpop.f32.mrb[0].mxu0
        %v546 = vadd.f32 %v301, %v545
        %v547 = vpop.f32.mrb[0].mxu0
        %v548 = vpop.f32.mrb[0].mxu0
        %v549 = vadd.f32 %v301, %v548
        %v550 = vpop.f32.mrb[0].mxu0
        %551 = vmatprep.mubr.bf16.mxu0 0
        %552 = vmatmul.mubr.bf16.gmra.mrb[0].mxu0 %v376
        %v553 = vpop.f32.mrb[0].mxu0
        %v554 = vadd.f32 %v301, %v553
        %v555 = vpop.f32.mrb[0].mxu0
        %v556 = vpop.f32.mrb[0].mxu0
        %v557 = vadd.f32 %v301, %v556
        %v558 = vpop.f32.mrb[0].mxu0
        %559 = vmatprep.mubr.bf16.mxu0 0
        %560 = vmatmul.mubr.bf16.gmra.mrb[0].mxu0 %v377
        %v561 = vpop.f32.mrb[0].mxu0
        %v562 = vadd.f32 %v301, %v561
        %v563 = vpop.f32.mrb[0].mxu0
        %v564 = vpop.f32.mrb[0].mxu0
        %v565 = vadd.f32 %v301, %v564
        %v566 = vpop.f32.mrb[0].mxu0
        %567 = vmatprep.mubr.bf16.mxu0 0
        %568 = vmatmul.mubr.bf16.gmra.mrb[0].mxu0 %v378
        %v569 = vpop.f32.mrb[0].mxu0
        %v570 = vadd.f32 %v301, %v569
        %v571 = vpop.f32.mrb[0].mxu0
        %v572 = vpop.f32.mrb[0].mxu0
        %v573 = vadd.f32 %v301, %v572
        %v574 = vpop.f32.mrb[0].mxu0
        %575 = vmatprep.mubr.bf16.mxu0 0
        %576 = vmatmul.mubr.bf16.gmra.mrb[0].mxu0 %v379
        %v577 = vpop.f32.mrb[0].mxu0
        %v578 = vadd.f32 %v301, %v577
        %v579 = vpop.f32.mrb[0].mxu0
        %v580 = vpop.f32.mrb[0].mxu0
        %v581 = vadd.f32 %v301, %v580
        %v582 = vpop.f32.mrb[0].mxu0
        %583 = vmatprep.mubr.bf16.mxu0 0
        %584 = vmatmul.mubr.bf16.gmra.mrb[0].mxu0 %v380
        %v585 = vpop.f32.mrb[0].mxu0
        %v586 = vadd.f32 %v301, %v585
        %v587 = vpop.f32.mrb[0].mxu0
        %v588 = vpop.f32.mrb[0].mxu0
        %v589 = vadd.f32 %v301, %v588
        %v590 = vpop.f32.mrb[0].mxu0
        %591 = vmatprep.mubr.bf16.mxu0 0
        %592 = vmatmul.mubr.bf16.gmra.mrb[0].mxu0 %v381
        %v593 = vpop.f32.mrb[0].mxu0
        %v594 = vadd.f32 %v301, %v593
        %v595 = vpop.f32.mrb[0].mxu0
        %v596 = vpop.f32.mrb[0].mxu0
        %v597 = vadd.f32 %v301, %v596
        %v598 = vpop.f32.mrb[0].mxu0
        %599 = vmatprep.mubr.bf16.mxu0 0
        %600 = vmatmul.mubr.bf16.gmra.mrb[0].mxu0 %v382
        %v601 = vpop.f32.mrb[0].mxu0
        %v602 = vadd.f32 %v301, %v601
        %v603 = vpop.f32.mrb[0].mxu0
        %v604 = vpop.f32.mrb[0].mxu0
        %v605 = vadd.f32 %v301, %v604
        %v606 = vpop.f32.mrb[0].mxu0
        %607 = vdwg.mxu0
        %v608 = vmax.f32 %v482, 0.0
        %v609 = vmax.f32 %v485, 0.0
        %v610 = vmax.f32 %v490, 0.0
        %v611 = vmax.f32 %v493, 0.0
        %v612 = vmax.f32 %v498, 0.0
        %v613 = vmax.f32 %v501, 0.0
        %v614 = vmax.f32 %v506, 0.0
        %v615 = vmax.f32 %v509, 0.0
        %v616 = vmax.f32 %v514, 0.0
        %v617 = vmax.f32 %v517, 0.0
        %v618 = vmax.f32 %v522, 0.0
        %v619 = vmax.f32 %v525, 0.0
        %v620 = vmax.f32 %v530, 0.0
        %v621 = vmax.f32 %v533, 0.0
        %v622 = vmax.f32 %v538, 0.0
        %v623 = vmax.f32 %v541, 0.0
        %v624 = vmax.f32 %v546, 0.0
        %v625 = vmax.f32 %v549, 0.0
        %v626 = vmax.f32 %v554, 0.0
        %v627 = vmax.f32 %v557, 0.0
        %v628 = vmax.f32 %v562, 0.0
        %v629 = vmax.f32 %v565, 0.0
        %v630 = vmax.f32 %v570, 0.0
        %v631 = vmax.f32 %v573, 0.0
        %v632 = vmax.f32 %v578, 0.0
        %v633 = vmax.f32 %v581, 0.0
        %v634 = vmax.f32 %v586, 0.0
        %v635 = vmax.f32 %v589, 0.0
        %v636 = vmax.f32 %v594, 0.0
        %v637 = vmax.f32 %v597, 0.0
        %v638 = vmax.f32 %v602, 0.0
        %v639 = vmax.f32 %v605, 0.0
        %v640 = vpack.c.bf16 %v609, %v608
        %v641 = vpack.c.bf16 %v611, %v610
        %v642 = vpack.c.bf16 %v613, %v612
        %v643 = vpack.c.bf16 %v615, %v614
        %v644 = vpack.c.bf16 %v617, %v616
        %v645 = vpack.c.bf16 %v619, %v618
        %v646 = vpack.c.bf16 %v621, %v620
        %v647 = vpack.c.bf16 %v623, %v622
        %v648 = vpack.c.bf16 %v625, %v624
        %v649 = vpack.c.bf16 %v627, %v626
        %v650 = vpack.c.bf16 %v629, %v628
        %v651 = vpack.c.bf16 %v631, %v630
        %v652 = vpack.c.bf16 %v633, %v632
        %v653 = vpack.c.bf16 %v635, %v634
        %v654 = vpack.c.bf16 %v637, %v636
        %v655 = vpack.c.bf16 %v639, %v638
        %v656 = vld [vmem:[#allocation7] sm:$0xf]
        %v657 = vld [vmem:[#allocation7 + $0x4] sm:$0xf]
        %v658 = vld [vmem:[#allocation7 + $0x8] sm:$0xf]
        %v659 = vld [vmem:[#allocation7 + $0xc] sm:$0xf]
        %v660 = vld [vmem:[#allocation7 + $0x10] sm:$0xf]
        %v661 = vld [vmem:[#allocation7 + $0x14] sm:$0xf]
        %v662 = vld [vmem:[#allocation7 + $0x18] sm:$0xf]
        %v663 = vld [vmem:[#allocation7 + $0x1c] sm:$0xf]
        %v664 = vld [vmem:[#allocation7 + $0x20] sm:$0xf]
        %v665 = vld [vmem:[#allocation7 + $0x24] sm:$0xf]
        %v666 = vld [vmem:[#allocation7 + $0x28] sm:$0xf]
        %v667 = vld [vmem:[#allocation7 + $0x2c] sm:$0xf]
        %v668 = vld [vmem:[#allocation7 + $0x30] sm:$0xf]
        %v669 = vld [vmem:[#allocation7 + $0x34] sm:$0xf]
        %v670 = vld [vmem:[#allocation7 + $0x38] sm:$0xf]
        %v671 = vld [vmem:[#allocation7 + $0x3c] sm:$0xf]
        %v688 = vunpack.c.l.b16 %v656
        %v689 = vunpack.c.l.b16 %v657
        %v690 = vunpack.c.l.b16 %v658
        %v691 = vunpack.c.l.b16 %v659
        %v692 = vunpack.c.l.b16 %v660
        %v693 = vunpack.c.l.b16 %v661
        %v694 = vunpack.c.l.b16 %v662
        %v695 = vunpack.c.l.b16 %v663
        %v696 = vunpack.c.l.b16 %v664
        %v697 = vunpack.c.l.b16 %v665
        %v698 = vunpack.c.l.b16 %v666
        %v699 = vunpack.c.l.b16 %v667
        %v700 = vunpack.c.l.b16 %v668
        %v701 = vunpack.c.l.b16 %v669
        %v702 = vunpack.c.l.b16 %v670
        %v703 = vunpack.c.l.b16 %v671
        %v704 = vpack.c.b16 %v689, %v688
        %v705 = vpack.c.b16 %v691, %v690
        %v706 = vpack.c.b16 %v693, %v692
        %v707 = vpack.c.b16 %v695, %v694
        %v708 = vpack.c.b16 %v697, %v696
        %v709 = vpack.c.b16 %v699, %v698
        %v710 = vpack.c.b16 %v701, %v700
        %v711 = vpack.c.b16 %v703, %v702
        %720 = vmatprep.subr.bf16.mxu0 0
        %721 = vmatpush1.bf16.msra.mxu0 %v704
        %722 = vmatprep.subr.bf16.mxu0 0
        %723 = vmatpush1.bf16.msra.mxu0 %v705
        %724 = vmatprep.subr.bf16.mxu0 0
        %725 = vmatpush1.bf16.msra.mxu0 %v706
        %726 = vmatprep.subr.bf16.mxu0 0
        %727 = vmatpush1.bf16.msra.mxu0 %v707
        %728 = vmatprep.subr.bf16.mxu0 0
        %729 = vmatpush1.bf16.msra.mxu0 %v708
        %730 = vmatprep.subr.bf16.mxu0 0
        %731 = vmatpush1.bf16.msra.mxu0 %v709
        %732 = vmatprep.subr.bf16.mxu0 0
        %733 = vmatpush1.bf16.msra.mxu0 %v710
        %734 = vmatprep.subr.bf16.mxu0 0
        %735 = vmatpush1.bf16.msra.mxu0 %v711
        %736 = vmatprep.subr.bf16.mxu0 0
        %737 = vmatpush1.bf16.msra.mxu0 0
        %738 = vmatprep.subr.bf16.mxu0 0
        %739 = vmatpush1.bf16.msra.mxu0 0
        %740 = vmatprep.subr.bf16.mxu0 0
        %741 = vmatpush1.bf16.msra.mxu0 0
        %742 = vmatprep.subr.bf16.mxu0 0
        %743 = vmatpush1.bf16.msra.mxu0 0
        %744 = vmatprep.subr.bf16.mxu0 0
        %745 = vmatpush1.bf16.msra.mxu0 0
        %746 = vmatprep.subr.bf16.mxu0 0
        %747 = vmatpush1.bf16.msra.mxu0 0
        %748 = vmatprep.subr.bf16.mxu0 0
        %749 = vmatpush1.bf16.msra.mxu0 0
        %750 = vmatprep.subr.bf16.mxu0 0
        %751 = vmatpush1.bf16.msra.mxu0 0
        %752 = vmatprep.mubr.bf16.mxu0 0
        %753 = vmatmul.mubr.bf16.gmra.mrb[0].mxu0 %v640
        %v754 = vpop.f32.mrb[0].mxu0
        %v755 = vadd.f32 0.0, %v754
        %v756 = vpop.f32.mrb[0].mxu0
        %v757 = vpop.f32.mrb[0].mxu0
        %v758 = vadd.f32 0.0, %v757
        %v759 = vpop.f32.mrb[0].mxu0
        %760 = vmatprep.mubr.bf16.mxu0 0
        %761 = vmatmul.mubr.bf16.gmra.mrb[0].mxu0 %v641
        %v762 = vpop.f32.mrb[0].mxu0
        %v763 = vadd.f32 0.0, %v762
        %v764 = vpop.f32.mrb[0].mxu0
        %v765 = vpop.f32.mrb[0].mxu0
        %v766 = vadd.f32 0.0, %v765
        %v767 = vpop.f32.mrb[0].mxu0
        %768 = vmatprep.mubr.bf16.mxu0 0
        %769 = vmatmul.mubr.bf16.gmra.mrb[0].mxu0 %v642
        %v770 = vpop.f32.mrb[0].mxu0
        %v771 = vadd.f32 0.0, %v770
        %v772 = vpop.f32.mrb[0].mxu0
        %v773 = vpop.f32.mrb[0].mxu0
        %v774 = vadd.f32 0.0, %v773
        %v775 = vpop.f32.mrb[0].mxu0
        %776 = vmatprep.mubr.bf16.mxu0 0
        %777 = vmatmul.mubr.bf16.gmra.mrb[0].mxu0 %v643
        %v778 = vpop.f32.mrb[0].mxu0
        %v779 = vadd.f32 0.0, %v778
        %v780 = vpop.f32.mrb[0].mxu0
        %v781 = vpop.f32.mrb[0].mxu0
        %v782 = vadd.f32 0.0, %v781
        %v783 = vpop.f32.mrb[0].mxu0
        %784 = vmatprep.mubr.bf16.mxu0 0
        %785 = vmatmul.mubr.bf16.gmra.mrb[0].mxu0 %v644
        %v786 = vpop.f32.mrb[0].mxu0
        %v787 = vadd.f32 0.0, %v786
        %v788 = vpop.f32.mrb[0].mxu0
        %v789 = vpop.f32.mrb[0].mxu0
        %v790 = vadd.f32 0.0, %v789
        %v791 = vpop.f32.mrb[0].mxu0
        %792 = vmatprep.mubr.bf16.mxu0 0
        %793 = vmatmul.mubr.bf16.gmra.mrb[0].mxu0 %v645
        %v794 = vpop.f32.mrb[0].mxu0
        %v795 = vadd.f32 0.0, %v794
        %v796 = vpop.f32.mrb[0].mxu0
        %v797 = vpop.f32.mrb[0].mxu0
        %v798 = vadd.f32 0.0, %v797
        %v799 = vpop.f32.mrb[0].mxu0
        %800 = vmatprep.mubr.bf16.mxu0 0
        %801 = vmatmul.mubr.bf16.gmra.mrb[0].mxu0 %v646
        %v802 = vpop.f32.mrb[0].mxu0
        %v803 = vadd.f32 0.0, %v802
        %v804 = vpop.f32.mrb[0].mxu0
        %v805 = vpop.f32.mrb[0].mxu0
        %v806 = vadd.f32 0.0, %v805
        %v807 = vpop.f32.mrb[0].mxu0
        %808 = vmatprep.mubr.bf16.mxu0 0
        %809 = vmatmul.mubr.bf16.gmra.mrb[0].mxu0 %v647
        %v810 = vpop.f32.mrb[0].mxu0
        %v811 = vadd.f32 0.0, %v810
        %v812 = vpop.f32.mrb[0].mxu0
        %v813 = vpop.f32.mrb[0].mxu0
        %v814 = vadd.f32 0.0, %v813
        %v815 = vpop.f32.mrb[0].mxu0
        %816 = vmatprep.mubr.bf16.mxu0 0
        %817 = vmatmul.mubr.bf16.gmra.mrb[0].mxu0 %v648
        %v818 = vpop.f32.mrb[0].mxu0
        %v819 = vadd.f32 0.0, %v818
        %v820 = vpop.f32.mrb[0].mxu0
        %v821 = vpop.f32.mrb[0].mxu0
        %v822 = vadd.f32 0.0, %v821
        %v823 = vpop.f32.mrb[0].mxu0
        %824 = vmatprep.mubr.bf16.mxu0 0
        %825 = vmatmul.mubr.bf16.gmra.mrb[0].mxu0 %v649
        %v826 = vpop.f32.mrb[0].mxu0
        %v827 = vadd.f32 0.0, %v826
        %v828 = vpop.f32.mrb[0].mxu0
        %v829 = vpop.f32.mrb[0].mxu0
        %v830 = vadd.f32 0.0, %v829
        %v831 = vpop.f32.mrb[0].mxu0
        %832 = vmatprep.mubr.bf16.mxu0 0
        %833 = vmatmul.mubr.bf16.gmra.mrb[0].mxu0 %v650
        %v834 = vpop.f32.mrb[0].mxu0
        %v835 = vadd.f32 0.0, %v834
        %v836 = vpop.f32.mrb[0].mxu0
        %v837 = vpop.f32.mrb[0].mxu0
        %v838 = vadd.f32 0.0, %v837
        %v839 = vpop.f32.mrb[0].mxu0
        %840 = vmatprep.mubr.bf16.mxu0 0
        %841 = vmatmul.mubr.bf16.gmra.mrb[0].mxu0 %v651
        %v842 = vpop.f32.mrb[0].mxu0
        %v843 = vadd.f32 0.0, %v842
        %v844 = vpop.f32.mrb[0].mxu0
        %v845 = vpop.f32.mrb[0].mxu0
        %v846 = vadd.f32 0.0, %v845
        %v847 = vpop.f32.mrb[0].mxu0
        %848 = vmatprep.mubr.bf16.mxu0 0
        %849 = vmatmul.mubr.bf16.gmra.mrb[0].mxu0 %v652
        %v850 = vpop.f32.mrb[0].mxu0
        %v851 = vadd.f32 0.0, %v850
        %v852 = vpop.f32.mrb[0].mxu0
        %v853 = vpop.f32.mrb[0].mxu0
        %v854 = vadd.f32 0.0, %v853
        %v855 = vpop.f32.mrb[0].mxu0
        %856 = vmatprep.mubr.bf16.mxu0 0
        %857 = vmatmul.mubr.bf16.gmra.mrb[0].mxu0 %v653
        %v858 = vpop.f32.mrb[0].mxu0
        %v859 = vadd.f32 0.0, %v858
        %v860 = vpop.f32.mrb[0].mxu0
        %v861 = vpop.f32.mrb[0].mxu0
        %v862 = vadd.f32 0.0, %v861
        %v863 = vpop.f32.mrb[0].mxu0
        %864 = vmatprep.mubr.bf16.mxu0 0
        %865 = vmatmul.mubr.bf16.gmra.mrb[0].mxu0 %v654
        %v866 = vpop.f32.mrb[0].mxu0
        %v867 = vadd.f32 0.0, %v866
        %v868 = vpop.f32.mrb[0].mxu0
        %v869 = vpop.f32.mrb[0].mxu0
        %v870 = vadd.f32 0.0, %v869
        %v871 = vpop.f32.mrb[0].mxu0
        %872 = vmatprep.mubr.bf16.mxu0 0
        %873 = vmatmul.mubr.bf16.gmra.mrb[0].mxu0 %v655
        %v874 = vpop.f32.mrb[0].mxu0
        %v875 = vadd.f32 0.0, %v874
        %v876 = vpop.f32.mrb[0].mxu0
        %v877 = vpop.f32.mrb[0].mxu0
        %v878 = vadd.f32 0.0, %v877
        %v879 = vpop.f32.mrb[0].mxu0
        %880 = vdwg.mxu0
        %881 = vst [vmem:[%s244] sm:$0xff] %v755
        %882 = vst [vmem:[%s244 + $0x8] sm:$0xff] %v758
        %883 = vst [vmem:[%s244 + $0x10] sm:$0xff] %v763
        %884 = vst [vmem:[%s244 + $0x18] sm:$0xff] %v766
        %885 = vst [vmem:[%s244 + $0x20] sm:$0xff] %v771
        %886 = vst [vmem:[%s244 + $0x28] sm:$0xff] %v774
        %887 = vst [vmem:[%s244 + $0x30] sm:$0xff] %v779
        %888 = vst [vmem:[%s244 + $0x38] sm:$0xff] %v782
        %889 = vst [vmem:[%s244 + $0x40] sm:$0xff] %v787
        %890 = vst [vmem:[%s244 + $0x48] sm:$0xff] %v790
        %891 = vst [vmem:[%s244 + $0x50] sm:$0xff] %v795
        %892 = vst [vmem:[%s244 + $0x58] sm:$0xff] %v798
        %893 = vst [vmem:[%s244 + $0x60] sm:$0xff] %v803
        %894 = vst [vmem:[%s244 + $0x68] sm:$0xff] %v806
        %895 = vst [vmem:[%s244 + $0x70] sm:$0xff] %v811
        %896 = vst [vmem:[%s244 + $0x78] sm:$0xff] %v814
        %897 = vst [vmem:[%s244 + $0x80] sm:$0xff] %v819
        %898 = vst [vmem:[%s244 + $0x88] sm:$0xff] %v822
        %899 = vst [vmem:[%s244 + $0x90] sm:$0xff] %v827
        %900 = vst [vmem:[%s244 + $0x98] sm:$0xff] %v830
        %901 = vst [vmem:[%s244 + $0xa0] sm:$0xff] %v835
        %902 = vst [vmem:[%s244 + $0xa8] sm:$0xff] %v838
        %903 = vst [vmem:[%s244 + $0xb0] sm:$0xff] %v843
        %904 = vst [vmem:[%s244 + $0xb8] sm:$0xff] %v846
        %905 = vst [vmem:[%s244 + $0xc0] sm:$0xff] %v851
        %906 = vst [vmem:[%s244 + $0xc8] sm:$0xff] %v854
        %907 = vst [vmem:[%s244 + $0xd0] sm:$0xff] %v859
        %908 = vst [vmem:[%s244 + $0xd8] sm:$0xff] %v862
        %909 = vst [vmem:[%s244 + $0xe0] sm:$0xff] %v867
        %910 = vst [vmem:[%s244 + $0xe8] sm:$0xff] %v870
        %911 = vst [vmem:[%s244 + $0xf0] sm:$0xff] %v875
        %912 = vst [vmem:[%s244 + $0xf8] sm:$0xff] %v878
        %s913 = sand.u32 %s119, 1
        %s914 = scalar_lea.sflag [#allocation4], %s913
        %s915 = sand.u32 %s119, 1
        %s916 = smul.addr %s915, 256
        %s917 = scalar_lea.vmem [#allocation8], %s916
        // Predicated region
        $region49: #{tpu_custom_call.1} parent=35 // pred_check
          %p918 = pneg %p129
        $region50: #{tpu_custom_call.1} parent=35 // pred_check_branch
          %920 = sbr.rel (%p918) target = $region52
        $region51: #{tpu_custom_call.1} parent=35 // pred_region
          %s921 = smul.u32 32, %s22
          %s923 = ssub.s32 4096, 4096
          %924 = vsyncadd %s914, %s923
          %s925 = smul.addr %s921, 128
          %s926 = scalar_lea.hbm %s4, %s925
          %s927 = sshll.u32 %s917, 4
          %s928 = int_to_ptr.vmem [resolvable:$true] %s927
          %933 = dma.vmem_to_hbm [thread:$0]  %s928, 4096, %s926, %s914, 128, 128, 8
        $region52: #{tpu_custom_call.1} parent=35 // pred_fallthru
          _
      $region36: #{tpu_custom_call.1} parent=5 // pred_fallthru
        _
      %p934 = scmp.le.s32.totalorder 2, %s17
      // Predicated region
      $region53: #{tpu_custom_call.1} parent=5 // pred_check
        %p935 = pneg %p934
      $region54: #{tpu_custom_call.1} parent=5 // pred_check_branch
        %937 = sbr.rel (%p935) target = $region56
      $region55: #{tpu_custom_call.1} parent=5 // pred_region
        %s938 = ssub.s32 %s17, 2
        // Predicated region
        $region57: #{tpu_custom_call.1} parent=55 // pred_check
          %p939 = pneg %p135
        $region58: #{tpu_custom_call.1} parent=55 // pred_check_branch
          %941 = sbr.rel (%p939) target = $region60
        $region59: #{tpu_custom_call.1} parent=55 // pred_region
          %s942 = sand.u32 %s120, 1
          %s943 = scalar_lea.sflag [#allocation4], %s942
          %s944 = sand.u32 %s120, 1
          %s945 = smul.addr %s944, 256
          %s946 = scalar_lea.vmem [#allocation8], %s945
          %947 = dma.done %s943, 4096
        $region60: #{tpu_custom_call.1} parent=55 // pred_fallthru
          _
      $region56: #{tpu_custom_call.1} parent=5 // pred_fallthru
        _
    $region6: #{tpu_custom_call.1} parent=1 // loop_footer
      %s21 = sadd.s32 1, %s17
    $region7: #{tpu_custom_call.1} parent=1 // loop_footer_branch
      %16 = sbr.rel target = $region3
    $region8: #{tpu_custom_call.1} parent=1 // loop_exit
      _
    %948 = vsyncpa [#allocation3], 1
    %s949 = scalar_lea.sflag [#allocation3], 1
    %950 = vsyncpa %s949, 1
    %951 = vsyncpa [#allocation6], 1
    %952 = vsyncpa [#allocation4], 1
    %s953 = scalar_lea.sflag [#allocation4], 1
    %954 = vsyncpa %s953, 1

</llo_original>
